<compile_context>
chip_gen: v7x
topology: tpu7x:2x2x1
jax: 0.10.0
libtpu: 0.0.40
codegen_flags: <defaults>
</compile_context>

<pallas_src>
import functools

import jax
import jax.numpy as jnp
from jax import lax
from jax.experimental import pallas as pl
from jax.experimental.pallas import tpu as pltpu

LANE = 128        # vreg lane width
SUBLANES = 8      # vreg sublane count
BS_MAX = 32       # max batch sublane-groups per block (4 vregs of carried state)
TT_CAP = 512      # hard cap on timesteps per grid chunk
VMEM_TILE_BUDGET = 24 * 1024 * 1024   # 3 arrays x 2 pipeline buffers under this


def _cdiv(a, b):
    return -(-a // b)


def _make_kernel(unroll):
    def fishrnn_kernel(params_ref, eff_ref, cat_ref, bio_ref, bm_ref):
        # params_ref : SMEM (4,) f32 -> [r, K, q, B0]   (normalized parameter space)
        # eff_ref    : VMEM (TT, BS, 128) efforts block (time, batch-sublane-group, lane)
        # cat_ref / bio_ref : VMEM (TT, BS, 128) outputs (pred. catches / biomass)
        # bm_ref     : VMEM (BS, 128) biomass state carried across time chunks
        r = params_ref[0]
        K = params_ref[1]
        q = params_ref[2]
        B0 = params_ref[3]
        r_over_k = r / K          # hoisted: no per-step divide on the serial chain
        one_plus_r = 1.0 + r

        @pl.when(pl.program_id(1) == 0)   # first time chunk: init carried biomass
        def _init():
            bm_ref[...] = jnp.full(bm_ref.shape, B0, dtype=jnp.float32)

        TT = eff_ref.shape[0]

        def step(t, Bm):
            e_t = eff_ref[t]                 # (BS, 128)  — single load per step
            qE_t = q * e_t                   # off the serial chain
            cat_ref[t] = qE_t * Bm           # predicted catch (off critical chain)
            bio_ref[t] = Bm                  # biomass before update (B_t)
            # Schaefer recurrence, refactored: B*((1 + r - qE) - (r/K)B) — 4-op chain
            Bm_next = Bm * ((one_plus_r - qE_t) - r_over_k * Bm)
            return jnp.maximum(Bm_next, 0.0)

        bm_ref[...] = lax.fori_loop(0, TT, step, bm_ref[...], unroll=unroll)

    return fishrnn_kernel


def fishrnn_forward(params, x1, x2=None):
    """FishRNN forward pass (Schaefer surplus-production recurrence).

    params : (4,) f32  [r, K, q, B0]  (normalized parameter space)
    x1     : (T, B) f32 efforts, TIME-MAJOR.  (A PyTorch (B, T) caller should
             transpose once at the framework boundary / store time-major.)
    x2     : observed catches — only used by the training loss; ignored here.
    returns (predicted_catches, biomass), each (T, B) f32.
    """
    del x2  # only used by the training loss in the reference module
    eff = jnp.asarray(x1, jnp.float32)
    T, B = eff.shape

    # ---- batch tiling: pack batch densely into (sublane-group, lane) --------
    n_sub = _cdiv(B, LANE)
    n_sub8 = _cdiv(n_sub, SUBLANES) * SUBLANES     # always full 8-sublane groups
    if n_sub8 >= 2 * SUBLANES:
        # Enough work for >=2 batch blocks: cap block so both TCs get work on
        # v7x, but grow it (up to BS_MAX) so 2-4 independent recurrence chains
        # interleave per step and hide VPU latency.
        half = (n_sub8 // 2 // SUBLANES) * SUBLANES
        bs_blk = max(SUBLANES, min(BS_MAX, half))
    else:
        bs_blk = SUBLANES
    n_sub_pad = _cdiv(n_sub8, bs_blk) * bs_blk
    B_pad = n_sub_pad * LANE

    # Unroll only needs to cover chain latency; more state vregs already do.
    unroll = 8 if bs_blk <= SUBLANES else 4

    # ---- time chunking: bound VMEM (3 arrays x 2 buffers <= budget) ---------
    bytes_per_step = bs_blk * LANE * 4
    tt_budget = VMEM_TILE_BUDGET // (6 * bytes_per_step)
    tt_max = max(unroll, min(TT_CAP, (tt_budget // unroll) * unroll))
    n_tc = _cdiv(T, tt_max)
    tt = _cdiv(_cdiv(T, n_tc), unroll) * unroll    # multiple of unroll: no epilogue
    T_pad = n_tc * tt

    eff_p = jnp.pad(eff, ((0, T_pad - T), (0, B_pad - B)))
    eff3 = eff_p.reshape(T_pad, n_sub_pad, LANE)   # free row-major reshape

    blk = (tt, bs_blk, LANE)
    idx = lambda bi, ti: (ti, bi, 0)

    cat3, bio3 = pl.pallas_call(
        _make_kernel(unroll),
        out_shape=(
            jax.ShapeDtypeStruct((T_pad, n_sub_pad, LANE), jnp.float32),
            jax.ShapeDtypeStruct((T_pad, n_sub_pad, LANE), jnp.float32),
        ),
        grid_spec=pltpu.PrefetchScalarGridSpec(
            num_scalar_prefetch=0,
            grid=(n_sub_pad // bs_blk, n_tc),        # (batch blocks, time chunks)
            in_specs=[
                pl.BlockSpec(memory_space=pltpu.MemorySpace.SMEM),   # params
                pl.BlockSpec(blk, idx),                              # efforts
            ],
            out_specs=(
                pl.BlockSpec(blk, idx),
                pl.BlockSpec(blk, idx),
            ),
            scratch_shapes=[pltpu.VMEM((bs_blk, LANE), jnp.float32)],  # biomass carry
        ),
        compiler_params=pltpu.CompilerParams(
            dimension_semantics=("parallel", "arbitrary"),
            vmem_limit_bytes=48 * 1024 * 1024,   # safe on v7x (64 MiB physical)
        ),
    )(jnp.asarray(params, jnp.float32), eff3)

    cat = cat3.reshape(T_pad, B_pad)[:T, :B]
    bio = bio3.reshape(T_pad, B_pad)[:T, :B]
    return cat, bio


def fishrnn_reference(params, x1):
    """Pure-JAX reference (lax.scan, un-refactored Schaefer form), time-major."""
    r, K, q, B0 = [jnp.float32(v) for v in params]
    eff = jnp.asarray(x1, jnp.float32)            # (T, B)
    Bsz = eff.shape[1]

    def step(Bm, e_t):
        catch = q * e_t * Bm
        Bm_next = jnp.maximum(Bm + r * Bm * (1.0 - Bm / K) - catch, 0.0)
        return Bm_next, (catch, Bm)

    _, (catches, biomass) = lax.scan(step, jnp.full((Bsz,), B0, jnp.float32), eff)
    return catches, biomass


if __name__ == "__main__":
    key = jax.random.PRNGKey(0)
    # deterministic normalized parameters: r, K, q, B0
    params = jnp.array([0.3, 1.0, 0.5, 0.8], dtype=jnp.float32)

    # --- small smoke test (seq=8, batch=4), time-major (T, B) -----------------
    T, B = 8, 4
    x1 = jax.random.uniform(key, (T, B), jnp.float32, minval=0.1, maxval=1.0)
    x2 = jax.random.uniform(jax.random.fold_in(key, 1), (T, B), jnp.float32)

    cat_pred, biomass = fishrnn_forward(params, x1, x2)
    jax.block_until_ready((cat_pred, biomass))

    ref_cat, ref_bio = fishrnn_reference(params, x1)
    assert jnp.allclose(cat_pred, ref_cat, atol=1e-5, rtol=1e-5)
    assert jnp.allclose(biomass, ref_bio, atol=1e-5, rtol=1e-5)

    # --- larger test exercising the grid: 2 batch blocks x 2 time chunks ------
    T2, B2 = 600, 1200
    x1b = jax.random.uniform(jax.random.fold_in(key, 2), (T2, B2), jnp.float32,
                             minval=0.1, maxval=1.0)
    cat2, bio2 = fishrnn_forward(params, x1b)
    jax.block_until_ready((cat2, bio2))

    rc2, rb2 = fishrnn_reference(params, x1b)
    # slightly looser rtol: the algebraic refactor reassociates rounding over T steps
    assert jnp.allclose(cat2, rc2, atol=1e-5, rtol=5e-4)
    assert jnp.allclose(bio2, rb2, atol=1e-5, rtol=5e-4)

    print("KERNEL_OK")
</pallas_src>

<mosaic_0001>
module attributes {stable_mosaic.version = 11 : i64} {
  func.func @fishrnn_kernel(%arg0: i32, %arg1: i32, %arg2: memref<4xf32, #tpu.memory_space<smem>>, %arg3: memref<8x8x128xf32, #tpu.memory_space<vmem>>, %arg4: memref<8x8x128xf32, #tpu.memory_space<vmem>>, %arg5: memref<8x8x128xf32, #tpu.memory_space<vmem>>, %arg6: memref<8x128xf32, #tpu.memory_space<vmem>>) attributes {dimension_semantics = [#tpu.dimension_semantics<parallel>, #tpu.dimension_semantics<arbitrary>], iteration_bounds = array<i64: 1, 1>, scalar_prefetch = 0 : i64, scratch_operands = 1 : i64, tpu.core_type = #tpu.core_type<tc>, window_params = [{transform_indices = @transform_0, window_bounds = array<i64: 4>}, {transform_indices = @transform_1, window_bounds = array<i64: 8, 8, 128>}, {transform_indices = @transform_2, window_bounds = array<i64: 8, 8, 128>}, {transform_indices = @transform_3, window_bounds = array<i64: 8, 8, 128>}]} {
    %c0 = arith.constant 0 : index
    %0 = memref.load %arg2[%c0] : memref<4xf32, #tpu.memory_space<smem>>
    %c1 = arith.constant 1 : index
    %1 = memref.load %arg2[%c1] : memref<4xf32, #tpu.memory_space<smem>>
    %c2 = arith.constant 2 : index
    %2 = memref.load %arg2[%c2] : memref<4xf32, #tpu.memory_space<smem>>
    %c3 = arith.constant 3 : index
    %3 = memref.load %arg2[%c3] : memref<4xf32, #tpu.memory_space<smem>>
    %4 = arith.divf %0, %1 : f32
    %cst = arith.constant 1.000000e+00 : f32
    %5 = arith.addf %cst, %0 : f32
    %c0_i32 = arith.constant 0 : i32
    %6 = arith.cmpi eq, %arg1, %c0_i32 : i32
    %7 = arith.extui %6 : i1 to i32
    %c0_i32_0 = arith.constant 0 : i32
    %8 = arith.cmpi ne, %7, %c0_i32_0 : i32
    scf.if %8 {
      %187 = vector.broadcast %3 : f32 to vector<8x128xf32>
      %c0_62 = arith.constant 0 : index
      %c0_63 = arith.constant 0 : index
      %188 = vector.load %arg6[%c0_62, %c0_63] : memref<8x128xf32, #tpu.memory_space<vmem>>, vector<8x128xf32>
      tpu.vector_store %arg6[%c0_62, %c0_63], %187 {strides = array<i32>} : memref<8x128xf32, #tpu.memory_space<vmem>>, vector<8x128xf32>,
    } else {
    }
    %c0_1 = arith.constant 0 : index
    %c0_2 = arith.constant 0 : index
    %9 = vector.load %arg6[%c0_1, %c0_2] : memref<8x128xf32, #tpu.memory_space<vmem>>, vector<8x128xf32>
    %c0_i32_3 = arith.constant 0 : i32
    %10 = arith.index_cast %c0_i32_3 : i32 to index
    %c0_4 = arith.constant 0 : index
    %c0_5 = arith.constant 0 : index
    %11 = vector.load %arg3[%10, %c0_4, %c0_5] : memref<8x8x128xf32, #tpu.memory_space<vmem>>, vector<1x8x128xf32>
    %12 = vector.shape_cast %11 : vector<1x8x128xf32> to vector<8x128xf32>
    %13 = vector.broadcast %2 : f32 to vector<8x128xf32>
    %14 = arith.mulf %13, %12 : vector<8x128xf32>
    %15 = arith.mulf %14, %9 : vector<8x128xf32>
    %16 = arith.index_cast %c0_i32_3 : i32 to index
    %c0_6 = arith.constant 0 : index
    %c0_7 = arith.constant 0 : index
    %17 = vector.load %arg4[%16, %c0_6, %c0_7] : memref<8x8x128xf32, #tpu.memory_space<vmem>>, vector<1x8x128xf32>
    %18 = vector.shape_cast %17 : vector<1x8x128xf32> to vector<8x128xf32>
    %19 = vector.shape_cast %15 : vector<8x128xf32> to vector<1x8x128xf32>
    tpu.vector_store %arg4[%16, %c0_6, %c0_7], %19 {strides = array<i32>} : memref<8x8x128xf32, #tpu.memory_space<vmem>>, vector<1x8x128xf32>,
    %20 = arith.index_cast %c0_i32_3 : i32 to index
    %c0_8 = arith.constant 0 : index
    %c0_9 = arith.constant 0 : index
    %21 = vector.load %arg5[%20, %c0_8, %c0_9] : memref<8x8x128xf32, #tpu.memory_space<vmem>>, vector<1x8x128xf32>
    %22 = vector.shape_cast %21 : vector<1x8x128xf32> to vector<8x128xf32>
    %23 = vector.shape_cast %9 : vector<8x128xf32> to vector<1x8x128xf32>
    tpu.vector_store %arg5[%20, %c0_8, %c0_9], %23 {strides = array<i32>} : memref<8x8x128xf32, #tpu.memory_space<vmem>>, vector<1x8x128xf32>,
    %24 = vector.broadcast %5 : f32 to vector<8x128xf32>
    %25 = arith.subf %24, %14 : vector<8x128xf32>
    %26 = vector.broadcast %4 : f32 to vector<8x128xf32>
    %27 = arith.mulf %26, %9 : vector<8x128xf32>
    %28 = arith.subf %25, %27 : vector<8x128xf32>
    %29 = arith.mulf %9, %28 : vector<8x128xf32>
    %cst_10 = arith.constant 0.000000e+00 : f32
    %30 = vector.broadcast %cst_10 : f32 to vector<8x128xf32>
    %31 = arith.maximumf %29, %30 : vector<8x128xf32>
    %c1_i32 = arith.constant 1 : i32
    %32 = arith.index_cast %c1_i32 : i32 to index
    %c0_11 = arith.constant 0 : index
    %c0_12 = arith.constant 0 : index
    %33 = vector.load %arg3[%32, %c0_11, %c0_12] : memref<8x8x128xf32, #tpu.memory_space<vmem>>, vector<1x8x128xf32>
    %34 = vector.shape_cast %33 : vector<1x8x128xf32> to vector<8x128xf32>
    %35 = vector.broadcast %2 : f32 to vector<8x128xf32>
    %36 = arith.mulf %35, %34 : vector<8x128xf32>
    %37 = arith.mulf %36, %31 : vector<8x128xf32>
    %38 = arith.index_cast %c1_i32 : i32 to index
    %c0_13 = arith.constant 0 : index
    %c0_14 = arith.constant 0 : index
    %39 = vector.load %arg4[%38, %c0_13, %c0_14] : memref<8x8x128xf32, #tpu.memory_space<vmem>>, vector<1x8x128xf32>
    %40 = vector.shape_cast %39 : vector<1x8x128xf32> to vector<8x128xf32>
    %41 = vector.shape_cast %37 : vector<8x128xf32> to vector<1x8x128xf32>
    tpu.vector_store %arg4[%38, %c0_13, %c0_14], %41 {strides = array<i32>} : memref<8x8x128xf32, #tpu.memory_space<vmem>>, vector<1x8x128xf32>,
    %42 = arith.index_cast %c1_i32 : i32 to index
    %c0_15 = arith.constant 0 : index
    %c0_16 = arith.constant 0 : index
    %43 = vector.load %arg5[%42, %c0_15, %c0_16] : memref<8x8x128xf32, #tpu.memory_space<vmem>>, vector<1x8x128xf32>
    %44 = vector.shape_cast %43 : vector<1x8x128xf32> to vector<8x128xf32>
    %45 = vector.shape_cast %31 : vector<8x128xf32> to vector<1x8x128xf32>
    tpu.vector_store %arg5[%42, %c0_15, %c0_16], %45 {strides = array<i32>} : memref<8x8x128xf32, #tpu.memory_space<vmem>>, vector<1x8x128xf32>,
    %46 = vector.broadcast %5 : f32 to vector<8x128xf32>
    %47 = arith.subf %46, %36 : vector<8x128xf32>
    %48 = vector.broadcast %4 : f32 to vector<8x128xf32>
    %49 = arith.mulf %48, %31 : vector<8x128xf32>
    %50 = arith.subf %47, %49 : vector<8x128xf32>
    %51 = arith.mulf %31, %50 : vector<8x128xf32>
    %cst_17 = arith.constant 0.000000e+00 : f32
    %52 = vector.broadcast %cst_17 : f32 to vector<8x128xf32>
    %53 = arith.maximumf %51, %52 : vector<8x128xf32>
    %c2_i32 = arith.constant 2 : i32
    %54 = arith.index_cast %c2_i32 : i32 to index
    %c0_18 = arith.constant 0 : index
    %c0_19 = arith.constant 0 : index
    %55 = vector.load %arg3[%54, %c0_18, %c0_19] : memref<8x8x128xf32, #tpu.memory_space<vmem>>, vector<1x8x128xf32>
    %56 = vector.shape_cast %55 : vector<1x8x128xf32> to vector<8x128xf32>
    %57 = vector.broadcast %2 : f32 to vector<8x128xf32>
    %58 = arith.mulf %57, %56 : vector<8x128xf32>
    %59 = arith.mulf %58, %53 : vector<8x128xf32>
    %60 = arith.index_cast %c2_i32 : i32 to index
    %c0_20 = arith.constant 0 : index
    %c0_21 = arith.constant 0 : index
    %61 = vector.load %arg4[%60, %c0_20, %c0_21] : memref<8x8x128xf32, #tpu.memory_space<vmem>>, vector<1x8x128xf32>
    %62 = vector.shape_cast %61 : vector<1x8x128xf32> to vector<8x128xf32>
    %63 = vector.shape_cast %59 : vector<8x128xf32> to vector<1x8x128xf32>
    tpu.vector_store %arg4[%60, %c0_20, %c0_21], %63 {strides = array<i32>} : memref<8x8x128xf32, #tpu.memory_space<vmem>>, vector<1x8x128xf32>,
    %64 = arith.index_cast %c2_i32 : i32 to index
    %c0_22 = arith.constant 0 : index
    %c0_23 = arith.constant 0 : index
    %65 = vector.load %arg5[%64, %c0_22, %c0_23] : memref<8x8x128xf32, #tpu.memory_space<vmem>>, vector<1x8x128xf32>
    %66 = vector.shape_cast %65 : vector<1x8x128xf32> to vector<8x128xf32>
    %67 = vector.shape_cast %53 : vector<8x128xf32> to vector<1x8x128xf32>
    tpu.vector_store %arg5[%64, %c0_22, %c0_23], %67 {strides = array<i32>} : memref<8x8x128xf32, #tpu.memory_space<vmem>>, vector<1x8x128xf32>,
    %68 = vector.broadcast %5 : f32 to vector<8x128xf32>
    %69 = arith.subf %68, %58 : vector<8x128xf32>
    %70 = vector.broadcast %4 : f32 to vector<8x128xf32>
    %71 = arith.mulf %70, %53 : vector<8x128xf32>
    %72 = arith.subf %69, %71 : vector<8x128xf32>
    %73 = arith.mulf %53, %72 : vector<8x128xf32>
    %cst_24 = arith.constant 0.000000e+00 : f32
    %74 = vector.broadcast %cst_24 : f32 to vector<8x128xf32>
    %75 = arith.maximumf %73, %74 : vector<8x128xf32>
    %c3_i32 = arith.constant 3 : i32
    %76 = arith.index_cast %c3_i32 : i32 to index
    %c0_25 = arith.constant 0 : index
    %c0_26 = arith.constant 0 : index
    %77 = vector.load %arg3[%76, %c0_25, %c0_26] : memref<8x8x128xf32, #tpu.memory_space<vmem>>, vector<1x8x128xf32>
    %78 = vector.shape_cast %77 : vector<1x8x128xf32> to vector<8x128xf32>
    %79 = vector.broadcast %2 : f32 to vector<8x128xf32>
    %80 = arith.mulf %79, %78 : vector<8x128xf32>
    %81 = arith.mulf %80, %75 : vector<8x128xf32>
    %82 = arith.index_cast %c3_i32 : i32 to index
    %c0_27 = arith.constant 0 : index
    %c0_28 = arith.constant 0 : index
    %83 = vector.load %arg4[%82, %c0_27, %c0_28] : memref<8x8x128xf32, #tpu.memory_space<vmem>>, vector<1x8x128xf32>
    %84 = vector.shape_cast %83 : vector<1x8x128xf32> to vector<8x128xf32>
    %85 = vector.shape_cast %81 : vector<8x128xf32> to vector<1x8x128xf32>
    tpu.vector_store %arg4[%82, %c0_27, %c0_28], %85 {strides = array<i32>} : memref<8x8x128xf32, #tpu.memory_space<vmem>>, vector<1x8x128xf32>,
    %86 = arith.index_cast %c3_i32 : i32 to index
    %c0_29 = arith.constant 0 : index
    %c0_30 = arith.constant 0 : index
    %87 = vector.load %arg5[%86, %c0_29, %c0_30] : memref<8x8x128xf32, #tpu.memory_space<vmem>>, vector<1x8x128xf32>
    %88 = vector.shape_cast %87 : vector<1x8x128xf32> to vector<8x128xf32>
    %89 = vector.shape_cast %75 : vector<8x128xf32> to vector<1x8x128xf32>
    tpu.vector_store %arg5[%86, %c0_29, %c0_30], %89 {strides = array<i32>} : memref<8x8x128xf32, #tpu.memory_space<vmem>>, vector<1x8x128xf32>,
    %90 = vector.broadcast %5 : f32 to vector<8x128xf32>
    %91 = arith.subf %90, %80 : vector<8x128xf32>
    %92 = vector.broadcast %4 : f32 to vector<8x128xf32>
    %93 = arith.mulf %92, %75 : vector<8x128xf32>
    %94 = arith.subf %91, %93 : vector<8x128xf32>
    %95 = arith.mulf %75, %94 : vector<8x128xf32>
    %cst_31 = arith.constant 0.000000e+00 : f32
    %96 = vector.broadcast %cst_31 : f32 to vector<8x128xf32>
    %97 = arith.maximumf %95, %96 : vector<8x128xf32>
    %c4_i32 = arith.constant 4 : i32
    %98 = arith.index_cast %c4_i32 : i32 to index
    %c0_32 = arith.constant 0 : index
    %c0_33 = arith.constant 0 : index
    %99 = vector.load %arg3[%98, %c0_32, %c0_33] : memref<8x8x128xf32, #tpu.memory_space<vmem>>, vector<1x8x128xf32>
    %100 = vector.shape_cast %99 : vector<1x8x128xf32> to vector<8x128xf32>
    %101 = vector.broadcast %2 : f32 to vector<8x128xf32>
    %102 = arith.mulf %101, %100 : vector<8x128xf32>
    %103 = arith.mulf %102, %97 : vector<8x128xf32>
    %104 = arith.index_cast %c4_i32 : i32 to index
    %c0_34 = arith.constant 0 : index
    %c0_35 = arith.constant 0 : index
    %105 = vector.load %arg4[%104, %c0_34, %c0_35] : memref<8x8x128xf32, #tpu.memory_space<vmem>>, vector<1x8x128xf32>
    %106 = vector.shape_cast %105 : vector<1x8x128xf32> to vector<8x128xf32>
    %107 = vector.shape_cast %103 : vector<8x128xf32> to vector<1x8x128xf32>
    tpu.vector_store %arg4[%104, %c0_34, %c0_35], %107 {strides = array<i32>} : memref<8x8x128xf32, #tpu.memory_space<vmem>>, vector<1x8x128xf32>,
    %108 = arith.index_cast %c4_i32 : i32 to index
    %c0_36 = arith.constant 0 : index
    %c0_37 = arith.constant 0 : index
    %109 = vector.load %arg5[%108, %c0_36, %c0_37] : memref<8x8x128xf32, #tpu.memory_space<vmem>>, vector<1x8x128xf32>
    %110 = vector.shape_cast %109 : vector<1x8x128xf32> to vector<8x128xf32>
    %111 = vector.shape_cast %97 : vector<8x128xf32> to vector<1x8x128xf32>
    tpu.vector_store %arg5[%108, %c0_36, %c0_37], %111 {strides = array<i32>} : memref<8x8x128xf32, #tpu.memory_space<vmem>>, vector<1x8x128xf32>,
    %112 = vector.broadcast %5 : f32 to vector<8x128xf32>
    %113 = arith.subf %112, %102 : vector<8x128xf32>
    %114 = vector.broadcast %4 : f32 to vector<8x128xf32>
    %115 = arith.mulf %114, %97 : vector<8x128xf32>
    %116 = arith.subf %113, %115 : vector<8x128xf32>
    %117 = arith.mulf %97, %116 : vector<8x128xf32>
    %cst_38 = arith.constant 0.000000e+00 : f32
    %118 = vector.broadcast %cst_38 : f32 to vector<8x128xf32>
    %119 = arith.maximumf %117, %118 : vector<8x128xf32>
    %c5_i32 = arith.constant 5 : i32
    %120 = arith.index_cast %c5_i32 : i32 to index
    %c0_39 = arith.constant 0 : index
    %c0_40 = arith.constant 0 : index
    %121 = vector.load %arg3[%120, %c0_39, %c0_40] : memref<8x8x128xf32, #tpu.memory_space<vmem>>, vector<1x8x128xf32>
    %122 = vector.shape_cast %121 : vector<1x8x128xf32> to vector<8x128xf32>
    %123 = vector.broadcast %2 : f32 to vector<8x128xf32>
    %124 = arith.mulf %123, %122 : vector<8x128xf32>
    %125 = arith.mulf %124, %119 : vector<8x128xf32>
    %126 = arith.index_cast %c5_i32 : i32 to index
    %c0_41 = arith.constant 0 : index
    %c0_42 = arith.constant 0 : index
    %127 = vector.load %arg4[%126, %c0_41, %c0_42] : memref<8x8x128xf32, #tpu.memory_space<vmem>>, vector<1x8x128xf32>
    %128 = vector.shape_cast %127 : vector<1x8x128xf32> to vector<8x128xf32>
    %129 = vector.shape_cast %125 : vector<8x128xf32> to vector<1x8x128xf32>
    tpu.vector_store %arg4[%126, %c0_41, %c0_42], %129 {strides = array<i32>} : memref<8x8x128xf32, #tpu.memory_space<vmem>>, vector<1x8x128xf32>,
    %130 = arith.index_cast %c5_i32 : i32 to index
    %c0_43 = arith.constant 0 : index
    %c0_44 = arith.constant 0 : index
    %131 = vector.load %arg5[%130, %c0_43, %c0_44] : memref<8x8x128xf32, #tpu.memory_space<vmem>>, vector<1x8x128xf32>
    %132 = vector.shape_cast %131 : vector<1x8x128xf32> to vector<8x128xf32>
    %133 = vector.shape_cast %119 : vector<8x128xf32> to vector<1x8x128xf32>
    tpu.vector_store %arg5[%130, %c0_43, %c0_44], %133 {strides = array<i32>} : memref<8x8x128xf32, #tpu.memory_space<vmem>>, vector<1x8x128xf32>,
    %134 = vector.broadcast %5 : f32 to vector<8x128xf32>
    %135 = arith.subf %134, %124 : vector<8x128xf32>
    %136 = vector.broadcast %4 : f32 to vector<8x128xf32>
    %137 = arith.mulf %136, %119 : vector<8x128xf32>
    %138 = arith.subf %135, %137 : vector<8x128xf32>
    %139 = arith.mulf %119, %138 : vector<8x128xf32>
    %cst_45 = arith.constant 0.000000e+00 : f32
    %140 = vector.broadcast %cst_45 : f32 to vector<8x128xf32>
    %141 = arith.maximumf %139, %140 : vector<8x128xf32>
    %c6_i32 = arith.constant 6 : i32
    %142 = arith.index_cast %c6_i32 : i32 to index
    %c0_46 = arith.constant 0 : index
    %c0_47 = arith.constant 0 : index
    %143 = vector.load %arg3[%142, %c0_46, %c0_47] : memref<8x8x128xf32, #tpu.memory_space<vmem>>, vector<1x8x128xf32>
    %144 = vector.shape_cast %143 : vector<1x8x128xf32> to vector<8x128xf32>
    %145 = vector.broadcast %2 : f32 to vector<8x128xf32>
    %146 = arith.mulf %145, %144 : vector<8x128xf32>
    %147 = arith.mulf %146, %141 : vector<8x128xf32>
    %148 = arith.index_cast %c6_i32 : i32 to index
    %c0_48 = arith.constant 0 : index
    %c0_49 = arith.constant 0 : index
    %149 = vector.load %arg4[%148, %c0_48, %c0_49] : memref<8x8x128xf32, #tpu.memory_space<vmem>>, vector<1x8x128xf32>
    %150 = vector.shape_cast %149 : vector<1x8x128xf32> to vector<8x128xf32>
    %151 = vector.shape_cast %147 : vector<8x128xf32> to vector<1x8x128xf32>
    tpu.vector_store %arg4[%148, %c0_48, %c0_49], %151 {strides = array<i32>} : memref<8x8x128xf32, #tpu.memory_space<vmem>>, vector<1x8x128xf32>,
    %152 = arith.index_cast %c6_i32 : i32 to index
    %c0_50 = arith.constant 0 : index
    %c0_51 = arith.constant 0 : index
    %153 = vector.load %arg5[%152, %c0_50, %c0_51] : memref<8x8x128xf32, #tpu.memory_space<vmem>>, vector<1x8x128xf32>
    %154 = vector.shape_cast %153 : vector<1x8x128xf32> to vector<8x128xf32>
    %155 = vector.shape_cast %141 : vector<8x128xf32> to vector<1x8x128xf32>
    tpu.vector_store %arg5[%152, %c0_50, %c0_51], %155 {strides = array<i32>} : memref<8x8x128xf32, #tpu.memory_space<vmem>>, vector<1x8x128xf32>,
    %156 = vector.broadcast %5 : f32 to vector<8x128xf32>
    %157 = arith.subf %156, %146 : vector<8x128xf32>
    %158 = vector.broadcast %4 : f32 to vector<8x128xf32>
    %159 = arith.mulf %158, %141 : vector<8x128xf32>
    %160 = arith.subf %157, %159 : vector<8x128xf32>
    %161 = arith.mulf %141, %160 : vector<8x128xf32>
    %cst_52 = arith.constant 0.000000e+00 : f32
    %162 = vector.broadcast %cst_52 : f32 to vector<8x128xf32>
    %163 = arith.maximumf %161, %162 : vector<8x128xf32>
    %c7_i32 = arith.constant 7 : i32
    %164 = arith.index_cast %c7_i32 : i32 to index
    %c0_53 = arith.constant 0 : index
    %c0_54 = arith.constant 0 : index
    %165 = vector.load %arg3[%164, %c0_53, %c0_54] : memref<8x8x128xf32, #tpu.memory_space<vmem>>, vector<1x8x128xf32>
    %166 = vector.shape_cast %165 : vector<1x8x128xf32> to vector<8x128xf32>
    %167 = vector.broadcast %2 : f32 to vector<8x128xf32>
    %168 = arith.mulf %167, %166 : vector<8x128xf32>
    %169 = arith.mulf %168, %163 : vector<8x128xf32>
    %170 = arith.index_cast %c7_i32 : i32 to index
    %c0_55 = arith.constant 0 : index
    %c0_56 = arith.constant 0 : index
    %171 = vector.load %arg4[%170, %c0_55, %c0_56] : memref<8x8x128xf32, #tpu.memory_space<vmem>>, vector<1x8x128xf32>
    %172 = vector.shape_cast %171 : vector<1x8x128xf32> to vector<8x128xf32>
    %173 = vector.shape_cast %169 : vector<8x128xf32> to vector<1x8x128xf32>
    tpu.vector_store %arg4[%170, %c0_55, %c0_56], %173 {strides = array<i32>} : memref<8x8x128xf32, #tpu.memory_space<vmem>>, vector<1x8x128xf32>,
    %174 = arith.index_cast %c7_i32 : i32 to index
    %c0_57 = arith.constant 0 : index
    %c0_58 = arith.constant 0 : index
    %175 = vector.load %arg5[%174, %c0_57, %c0_58] : memref<8x8x128xf32, #tpu.memory_space<vmem>>, vector<1x8x128xf32>
    %176 = vector.shape_cast %175 : vector<1x8x128xf32> to vector<8x128xf32>
    %177 = vector.shape_cast %163 : vector<8x128xf32> to vector<1x8x128xf32>
    tpu.vector_store %arg5[%174, %c0_57, %c0_58], %177 {strides = array<i32>} : memref<8x8x128xf32, #tpu.memory_space<vmem>>, vector<1x8x128xf32>,
    %178 = vector.broadcast %5 : f32 to vector<8x128xf32>
    %179 = arith.subf %178, %168 : vector<8x128xf32>
    %180 = vector.broadcast %4 : f32 to vector<8x128xf32>
    %181 = arith.mulf %180, %163 : vector<8x128xf32>
    %182 = arith.subf %179, %181 : vector<8x128xf32>
    %183 = arith.mulf %163, %182 : vector<8x128xf32>
    %cst_59 = arith.constant 0.000000e+00 : f32
    %184 = vector.broadcast %cst_59 : f32 to vector<8x128xf32>
    %185 = arith.maximumf %183, %184 : vector<8x128xf32>
    %c8_i32 = arith.constant 8 : i32
    %c0_60 = arith.constant 0 : index
    %c0_61 = arith.constant 0 : index
    %186 = vector.load %arg6[%c0_60, %c0_61] : memref<8x128xf32, #tpu.memory_space<vmem>>, vector<8x128xf32>
    tpu.vector_store %arg6[%c0_60, %c0_61], %185 {strides = array<i32>} : memref<8x128xf32, #tpu.memory_space<vmem>>, vector<8x128xf32>,
    return
  }
  func.func @transform_0(%arg0: i32, %arg1: i32) -> i32 {
    %c0_i32 = arith.constant 0 : i32
    %c0_i32_0 = arith.constant 0 : i32
    return %c0_i32 : i32
  }
  func.func @transform_1(%arg0: i32, %arg1: i32) -> (i32, i32, i32) {
    %c0_i32 = arith.constant 0 : i32
    %c0_i32_0 = arith.constant 0 : i32
    return %arg1, %arg0, %c0_i32 : i32, i32, i32
  }
  func.func @transform_2(%arg0: i32, %arg1: i32) -> (i32, i32, i32) {
    %c0_i32 = arith.constant 0 : i32
    %c0_i32_0 = arith.constant 0 : i32
    return %arg1, %arg0, %c0_i32 : i32, i32, i32
  }
  func.func @transform_3(%arg0: i32, %arg1: i32) -> (i32, i32, i32) {
    %c0_i32 = arith.constant 0 : i32
    %c0_i32_0 = arith.constant 0 : i32
    return %arg1, %arg0, %c0_i32 : i32, i32, i32
  }
}

</mosaic_0001>

<llo_original>
// kernel: tpu_custom_call.1
$region0: #{tpu_custom_call.1}
  #allocation0 [shape = 'u32[]', space=smem, size = 0x4, offset = 0x4, fixed_abs, tag = 'smem constant byte address 0x4 - core index']
  #allocation1 [shape = 'u32[144,128]{1,0:T(1,128)}', space=vmem, size = 0x12000, scoped, tag = 'internal scratch']
  #allocation2 [shape = 'f32[8,128]{1,0:T(8,128)}', space=vmem, size = 0x1000, scoped, tag = 'scratch operand']
  %s0 = inlined_call_operand.hbm [shape: f32[4], index: 0, kind: input, shape index: {}]
  %s1 = inlined_call_operand.hbm [shape: f32[8,8,128], index: 1, kind: input, shape index: {}]
  %s2 = inlined_call_operand.hbm [shape: f32[8,8,128], index: 2, kind: output, shape index: {0}]
  %s3 = inlined_call_operand.hbm [shape: f32[8,8,128], index: 3, kind: output, shape index: {1}]
  %4 = xla_tuple %s2, %s3
  %s5 = sld [smem:[#allocation0]]
  $region38: #{tpu_custom_call.1} parent=0
    _
  %s7 = ssub.s32 1, %s5
  %s8 = scalar_select 0, %s7, %s5
  $region1: #{tpu_custom_call.1} parent=0
    #allocation3 [shape = 'u8[512]{0}', space=smem, size = 0x200, scoped, tag = 'input window, operand 0, single buffered']
    #allocation4 [shape = 's32[1]{0}', space=sflag, size = 0x4, scoped, tag = 'scoped memory for tpu_custom_call.1']
    #allocation5 [shape = 's32[1]{0}', space=sflag, size = 0x4, scoped, tag = 'scoped memory for tpu_custom_call.1']
    #allocation6 [shape = 's32[1]{0}', space=sflag, size = 0x4, scoped, tag = 'scoped memory for tpu_custom_call.1']
    #allocation7 [shape = 'u8[32768]{0}', space=vmem, size = 0x8000, scoped, tag = 'input window, operand 1, single buffered']
    #allocation8 [shape = 'u8[32768]{0}', space=vmem, size = 0x8000, scoped, tag = 'output window, operand 0, single buffered']
    #allocation9 [shape = 'u8[32768]{0}', space=vmem, size = 0x8000, scoped, tag = 'output window, operand 1, single buffered']
    #allocation10 [shape = 's32[1]{0}', space=sflag, size = 0x4, scoped, tag = 'scoped memory for tpu_custom_call.1']
    %9 = vsyncpa [#allocation6], 0
    %10 = vsyncpa [#allocation4], 0
    %11 = vsyncpa [#allocation5], 0
    %12 = vsyncpa [#allocation10], 0
    // Predicated region
    $region2: #{tpu_custom_call.1} parent=1 // pred_check
      _
    $region3: #{tpu_custom_call.1} parent=1 // pred_check_branch
      %14 = sbr.rel (0) target = $region5
    $region4: #{tpu_custom_call.1} parent=1 // pred_region
      %s16 = ssub.s32 16, 16
      %17 = vsyncadd [#allocation6], %s16
      %20 = dma.hbm_to_smem %s0, 16, [#allocation3], [#allocation6]
    $region5: #{tpu_custom_call.1} parent=1 // pred_fallthru
      _
    // Predicated region
    $region6: #{tpu_custom_call.1} parent=1 // pred_check
      _
    $region7: #{tpu_custom_call.1} parent=1 // pred_check_branch
      %22 = sbr.rel (0) target = $region9
    $region8: #{tpu_custom_call.1} parent=1 // pred_region
      %s24 = ssub.s32 1024, 1024
      %25 = vsyncadd [#allocation4], %s24
      %s26 = sshll.u32 [#allocation7], 4
      %s27 = int_to_ptr.vmem [resolvable:$true] %s26
      %32 = dma.hbm_to_vmem [thread:$0]  %s1, 1024, %s27, [#allocation4], 128, 128, 8
    $region9: #{tpu_custom_call.1} parent=1 // pred_fallthru
      _
    // Predicated region
    $region10: #{tpu_custom_call.1} parent=1 // pred_check
      _
    $region11: #{tpu_custom_call.1} parent=1 // pred_check_branch
      %34 = sbr.rel (0) target = $region13
    $region12: #{tpu_custom_call.1} parent=1 // pred_region
      %35 = dma.done [#allocation6], 16
    $region13: #{tpu_custom_call.1} parent=1 // pred_fallthru
      _
    // Predicated region
    $region14: #{tpu_custom_call.1} parent=1 // pred_check
      _
    $region15: #{tpu_custom_call.1} parent=1 // pred_check_branch
      %37 = sbr.rel (0) target = $region17
    $region16: #{tpu_custom_call.1} parent=1 // pred_region
      %38 = dma.done [#allocation4], 1024
    $region17: #{tpu_custom_call.1} parent=1 // pred_fallthru
      _
    %39 = sfence
    %s40 = sld [smem:[#allocation3]]
    %s41 = sld [smem:[#allocation3 + $0x1]]
    %s42 = sld [smem:[#allocation3 + $0x2]]
    %s43 = sld [smem:[#allocation3 + $0x3]]
    %v44 = vstv %s41
    %v45 = vrcp.pop %v44
    %s46 = vtos %v45
    %s47 = smul.f32 %s40, %s46
    %s48 = sadd.f32 %s40, 1.0
    %p49 = scmp.eq.s32.totalorder 0, 0
    // Predicated region
    $region18: #{tpu_custom_call.1} parent=1 // pred_check
      %p50 = pneg %p49
    $region19: #{tpu_custom_call.1} parent=1 // pred_check_branch
      %52 = sbr.rel (%p50) target = $region21
    $region20: #{tpu_custom_call.1} parent=1 // pred_region
      %v53 = vstv %s43
      %54 = vst [vmem:[#allocation2] sm:$0xff] %v53
    $region21: #{tpu_custom_call.1} parent=1 // pred_fallthru
      _
    %v55 = vld [vmem:[#allocation2] sm:$0xff]
    %v56 = vld [vmem:[#allocation7] sm:$0xff]
    %v57 = vstv %s42
    %v58 = vmul.f32 %v57, %v56
    %v59 = vmul.f32 %v58, %v55
    %60 = vst [vmem:[#allocation8] sm:$0xff] %v59
    %61 = vst [vmem:[#allocation9] sm:$0xff] %v55
    %v62 = vstv %s48
    %v63 = vsub.f32 %v62, %v58
    %v64 = vstv %s47
    %v65 = vmul.f32 %v64, %v55
    %v66 = vsub.f32 %v63, %v65
    %v67 = vmul.f32 %v55, %v66
    %v68 = vmax.f32 %v67, 0.0
    %s69 = scalar_lea.vmem [#allocation7], 8
    %v70 = vld [vmem:[%s69] sm:$0xff]
    %v71 = vmul.f32 %v57, %v70
    %v72 = vmul.f32 %v71, %v68
    %s73 = scalar_lea.vmem [#allocation8], 8
    %74 = vst [vmem:[%s73] sm:$0xff] %v72
    %s75 = scalar_lea.vmem [#allocation9], 8
    %76 = vst [vmem:[%s75] sm:$0xff] %v68
    %v77 = vsub.f32 %v62, %v71
    %v78 = vmul.f32 %v64, %v68
    %v79 = vsub.f32 %v77, %v78
    %v80 = vmul.f32 %v68, %v79
    %v81 = vmax.f32 %v80, 0.0
    %s82 = scalar_lea.vmem [#allocation7], 16
    %v83 = vld [vmem:[%s82] sm:$0xff]
    %v84 = vmul.f32 %v57, %v83
    %v85 = vmul.f32 %v84, %v81
    %s86 = scalar_lea.vmem [#allocation8], 16
    %87 = vst [vmem:[%s86] sm:$0xff] %v85
    %s88 = scalar_lea.vmem [#allocation9], 16
    %89 = vst [vmem:[%s88] sm:$0xff] %v81
    %v90 = vsub.f32 %v62, %v84
    %v91 = vmul.f32 %v64, %v81
    %v92 = vsub.f32 %v90, %v91
    %v93 = vmul.f32 %v81, %v92
    %v94 = vmax.f32 %v93, 0.0
    %s95 = scalar_lea.vmem [#allocation7], 24
    %v96 = vld [vmem:[%s95] sm:$0xff]
    %v97 = vmul.f32 %v57, %v96
    %v98 = vmul.f32 %v97, %v94
    %s99 = scalar_lea.vmem [#allocation8], 24
    %100 = vst [vmem:[%s99] sm:$0xff] %v98
    %s101 = scalar_lea.vmem [#allocation9], 24
    %102 = vst [vmem:[%s101] sm:$0xff] %v94
    %v103 = vsub.f32 %v62, %v97
    %v104 = vmul.f32 %v64, %v94
    %v105 = vsub.f32 %v103, %v104
    %v106 = vmul.f32 %v94, %v105
    %v107 = vmax.f32 %v106, 0.0
    %s108 = scalar_lea.vmem [#allocation7], 32
    %v109 = vld [vmem:[%s108] sm:$0xff]
    %v110 = vmul.f32 %v57, %v109
    %v111 = vmul.f32 %v110, %v107
    %s112 = scalar_lea.vmem [#allocation8], 32
    %113 = vst [vmem:[%s112] sm:$0xff] %v111
    %s114 = scalar_lea.vmem [#allocation9], 32
    %115 = vst [vmem:[%s114] sm:$0xff] %v107
    %v116 = vsub.f32 %v62, %v110
    %v117 = vmul.f32 %v64, %v107
    %v118 = vsub.f32 %v116, %v117
    %v119 = vmul.f32 %v107, %v118
    %v120 = vmax.f32 %v119, 0.0
    %s121 = scalar_lea.vmem [#allocation7], 40
    %v122 = vld [vmem:[%s121] sm:$0xff]
    %v123 = vmul.f32 %v57, %v122
    %v124 = vmul.f32 %v123, %v120
    %s125 = scalar_lea.vmem [#allocation8], 40
    %126 = vst [vmem:[%s125] sm:$0xff] %v124
    %s127 = scalar_lea.vmem [#allocation9], 40
    %128 = vst [vmem:[%s127] sm:$0xff] %v120
    %v129 = vsub.f32 %v62, %v123
    %v130 = vmul.f32 %v64, %v120
    %v131 = vsub.f32 %v129, %v130
    %v132 = vmul.f32 %v120, %v131
    %v133 = vmax.f32 %v132, 0.0
    %s134 = scalar_lea.vmem [#allocation7], 48
    %v135 = vld [vmem:[%s134] sm:$0xff]
    %v136 = vmul.f32 %v57, %v135
    %v137 = vmul.f32 %v136, %v133
    %s138 = scalar_lea.vmem [#allocation8], 48
    %139 = vst [vmem:[%s138] sm:$0xff] %v137
    %s140 = scalar_lea.vmem [#allocation9], 48
    %141 = vst [vmem:[%s140] sm:$0xff] %v133
    %v142 = vsub.f32 %v62, %v136
    %v143 = vmul.f32 %v64, %v133
    %v144 = vsub.f32 %v142, %v143
    %v145 = vmul.f32 %v133, %v144
    %v146 = vmax.f32 %v145, 0.0
    %s147 = scalar_lea.vmem [#allocation7], 56
    %v148 = vld [vmem:[%s147] sm:$0xff]
    %v149 = vmul.f32 %v57, %v148
    %v150 = vmul.f32 %v149, %v146
    %s151 = scalar_lea.vmem [#allocation8], 56
    %152 = vst [vmem:[%s151] sm:$0xff] %v150
    %s153 = scalar_lea.vmem [#allocation9], 56
    %154 = vst [vmem:[%s153] sm:$0xff] %v146
    %v155 = vsub.f32 %v62, %v149
    %v156 = vmul.f32 %v64, %v146
    %v157 = vsub.f32 %v155, %v156
    %v158 = vmul.f32 %v146, %v157
    %v159 = vmax.f32 %v158, 0.0
    %160 = vst [vmem:[#allocation2] sm:$0xff] %v159
    // Predicated region
    $region22: #{tpu_custom_call.1} parent=1 // pred_check
      _
    $region23: #{tpu_custom_call.1} parent=1 // pred_check_branch
      %162 = sbr.rel (0) target = $region25
    $region24: #{tpu_custom_call.1} parent=1 // pred_region
      %s164 = ssub.s32 1024, 1024
      %165 = vsyncadd [#allocation5], %s164
      %s166 = sshll.u32 [#allocation8], 4
      %s167 = int_to_ptr.vmem [resolvable:$true] %s166
      %172 = dma.vmem_to_hbm [thread:$0]  %s167, 1024, %s2, [#allocation5], 128, 128, 8
    $region25: #{tpu_custom_call.1} parent=1 // pred_fallthru
      _
    // Predicated region
    $region26: #{tpu_custom_call.1} parent=1 // pred_check
      _
    $region27: #{tpu_custom_call.1} parent=1 // pred_check_branch
      %174 = sbr.rel (0) target = $region29
    $region28: #{tpu_custom_call.1} parent=1 // pred_region
      %s176 = ssub.s32 1024, 1024
      %177 = vsyncadd [#allocation10], %s176
      %s178 = sshll.u32 [#allocation9], 4
      %s179 = int_to_ptr.vmem [resolvable:$true] %s178
      %184 = dma.vmem_to_hbm [thread:$0]  %s179, 1024, %s3, [#allocation10], 128, 128, 8
    $region29: #{tpu_custom_call.1} parent=1 // pred_fallthru
      _
    // Predicated region
    $region30: #{tpu_custom_call.1} parent=1 // pred_check
      _
    $region31: #{tpu_custom_call.1} parent=1 // pred_check_branch
      %186 = sbr.rel (0) target = $region33
    $region32: #{tpu_custom_call.1} parent=1 // pred_region
      %187 = dma.done [#allocation5], 1024
    $region33: #{tpu_custom_call.1} parent=1 // pred_fallthru
      _
    // Predicated region
    $region34: #{tpu_custom_call.1} parent=1 // pred_check
      _
    $region35: #{tpu_custom_call.1} parent=1 // pred_check_branch
      %189 = sbr.rel (0) target = $region37
    $region36: #{tpu_custom_call.1} parent=1 // pred_region
      %190 = dma.done [#allocation10], 1024
    $region37: #{tpu_custom_call.1} parent=1 // pred_fallthru
      _
    %191 = vsyncpa [#allocation4], 1
    %192 = vsyncpa [#allocation5], 1
    %193 = vsyncpa [#allocation10], 1
    %194 = vsyncpa [#allocation6], 1

</llo_original>
